<compile_context>
chip_gen: v5e
topology: v5e:2x2
jax: 0.10.0
libtpu: 0.0.40
codegen_flags: <defaults>
</compile_context>

<pallas_src>
import functools

import jax
import jax.numpy as jnp
from jax import lax
from jax.experimental import pallas as pl
from jax.experimental.pallas import tpu as pltpu


@functools.lru_cache(maxsize=None)
def _vmem_limit_bytes():
    """Generation-dependent VMEM budget: ~3/4 of physical capacity leaves
    headroom for Mosaic internal scratch (v5e/v6e 128 MiB -> 96 MiB,
    v7x 64 MiB -> 48 MiB). Falls back to a v7x-safe 48 MiB."""
    try:
        return int(pltpu.get_tpu_info().vmem_capacity_bytes) * 3 // 4
    except Exception:
        return 48 * 1024 * 1024


def _pick_tile(dim, preferred, align):
    """Largest multiple of `align` that divides `dim` and is <= `preferred`.
    Falls back to the full dim (untiled along this axis) if none exists; note
    that for odd large dims this can exceed the VMEM budget instead of
    failing loudly (acceptable for the small demo shapes here)."""
    if dim <= preferred:
        return dim
    best = None
    t = align
    while t <= preferred:
        if dim % t == 0:
            best = t
        t += align
    return best if best is not None else dim


# ----------------------------------------------------------------------------
# Conv1D (HF GPT-2 "Conv1D" == x @ W + b, W shape (in_features, out_features))
# Tiled + pipelined, bf16 MXU operands, f32 accumulator, bias on last K step.
# ----------------------------------------------------------------------------
def _linear_kernel(x_ref, w_ref, b_ref, o_ref, acc_ref):
    @pl.when(pl.program_id(2) == 0)
    def _init():
        acc_ref[...] = jnp.zeros_like(acc_ref)

    acc_ref[...] += jnp.dot(x_ref[...], w_ref[...],
                            preferred_element_type=jnp.float32)

    @pl.when(pl.program_id(2) == pl.num_programs(2) - 1)
    def _finalize():
        o_ref[...] = (acc_ref[...] + b_ref[...]).astype(o_ref.dtype)


def conv1d(x2d, w, b, *, out_dtype=None,
           tm_pref=512, tn_pref=512, tk_pref=512):
    """x2d: (M, K), w: (K, N), b: (N,) -> (M, N) in `out_dtype`.
    Operands are fed to the MXU as bf16; accumulation stays f32."""
    M, K = x2d.shape
    N = w.shape[1]
    out_dtype = x2d.dtype if out_dtype is None else out_dtype

    xb = x2d.astype(jnp.bfloat16)          # bf16 MXU operands: halves DMA bytes
    wb = w.astype(jnp.bfloat16)
    b2d = b.astype(jnp.float32).reshape(1, N)

    tm = _pick_tile(M, tm_pref, 16)        # 16 sublanes/vreg for bf16 rows
    tn = _pick_tile(N, tn_pref, 128)
    tk = _pick_tile(K, tk_pref, 128)
    grid = (M // tm, N // tn, K // tk)

    return pl.pallas_call(
        _linear_kernel,
        out_shape=jax.ShapeDtypeStruct((M, N), out_dtype),
        grid=grid,
        in_specs=[
            pl.BlockSpec((tm, tk), lambda i, j, k: (i, k)),
            pl.BlockSpec((tk, tn), lambda i, j, k: (k, j)),
            pl.BlockSpec((1, tn), lambda i, j, k: (0, j)),
        ],
        out_specs=pl.BlockSpec((tm, tn), lambda i, j, k: (i, j)),
        scratch_shapes=[pltpu.VMEM((tm, tn), jnp.float32)],
        compiler_params=pltpu.CompilerParams(
            dimension_semantics=("parallel", "parallel", "arbitrary"),
            vmem_limit_bytes=_vmem_limit_bytes()),
    )(xb, wb, b2d)


# ----------------------------------------------------------------------------
# Attention kernel: one (batch, q-row-block) per grid step, all heads at once.
# q/k/v slabs are sliced straight out of the fused bf16 qkv tensor by the
# BlockSpecs; each head's PV result is stored into its lane slice of the
# resident (1, tq, C) output block (no concatenate, no per-head live ranges).
# ----------------------------------------------------------------------------
def _attention_kernel(q_ref, k_ref, v_ref, mask_ref, o_ref, *,
                      num_heads, head_dim):
    tq = q_ref.shape[1]
    T = k_ref.shape[1]
    scale = 1.0 / (head_dim ** 0.5)

    # Combined causal + padding mask as ONE additive f32 bias, built once per
    # grid step and shared across heads. Semantics match the PyTorch module:
    #   padding key            -> -inf
    #   non-causal (valid key) -> finfo(f32).min
    #   otherwise              -> 0 (score passes through)
    q_start = pl.program_id(1) * tq
    row = lax.broadcasted_iota(jnp.int32, (tq, T), 0) + q_start
    col = lax.broadcasted_iota(jnp.int32, (tq, T), 1)
    key_valid = mask_ref[0] != 0                                    # (1, T)
    keep = jnp.logical_and(row >= col, key_valid)                   # (tq, T)
    neg = jnp.where(key_valid, jnp.finfo(jnp.float32).min, -jnp.inf)
    bias = jnp.where(keep, 0.0, neg).astype(jnp.float32)            # (tq, T)

    # Fold the 1/sqrt(D) scale into the q slab once (tq*C muls, stays bf16).
    qs = q_ref[0] * scale                                           # (tq, C) bf16
    kb = k_ref[0]                                                   # (T,  C) bf16
    vb = v_ref[0]                                                   # (T,  C) bf16

    contract_last = (((1,), (1,)), ((), ()))  # contract last axes, no batch dims

    # TODO(synk): for head_dim % 128 != 0 the per-head lane slices below are
    # not (8,128)-tile aligned (relayout copies per head); group 128//head_dim
    # heads per 128-lane window or make head a grid axis over a (B*H, T, D)
    # qkv view to remove them. D that is a multiple of 128 is already free.
    for h in range(num_heads):
        lo = h * head_dim
        hi = lo + head_dim
        s = lax.dot_general(qs[:, lo:hi], kb[:, lo:hi], contract_last,
                            preferred_element_type=jnp.float32)     # (tq, T) f32
        s = s + bias                                                 # single add

        m = jnp.max(s, axis=-1, keepdims=True)
        e = jnp.exp(s - m)
        denom = jnp.sum(e, axis=-1, keepdims=True)
        p = (e * pl.reciprocal(denom, approx=True)).astype(jnp.bfloat16)

        # Store this head's result directly into its lane slice of the
        # resident output block; the block is DMA'd back lane-dense once.
        o_ref[0, :, lo:hi] = jnp.dot(
            p, vb[:, lo:hi], preferred_element_type=jnp.float32
        ).astype(o_ref.dtype)


def fused_masked_attention(qkv, mask3, num_heads, head_dim, *,
                           single_buffer_kv=True):
    """qkv: (B, T, 3C) fused projections (bf16); mask3: (B, 1, T) int padding
    mask. Returns attention output in (B, T, C) layout (head-merged, bf16)."""
    B, T, _ = qkv.shape
    C = num_heads * head_dim
    tq = _pick_tile(T, 512, 16)
    grid = (B, T // tq)

    # TODO(synk): for long sequences (T >= ~2k) add a kv-block grid axis with
    # an online-softmax (flash-style) accumulator and pl.when causal block
    # skip, so K/V VMEM is bounded by tq*tk instead of full-T residency
    # (required to fit v7x's 64 MiB VMEM and halves exp/MXU work).
    kv_kwargs = {}
    if single_buffer_kv:
        # K/V block index only changes with the batch axis -> a single VMEM
        # buffer suffices; halves K/V footprint (matters on v7x's 64 MiB).
        kv_kwargs = dict(pipeline_mode=pl.Buffered(1))

    kernel = functools.partial(_attention_kernel,
                               num_heads=num_heads, head_dim=head_dim)
    return pl.pallas_call(
        kernel,
        out_shape=jax.ShapeDtypeStruct((B, T, C), qkv.dtype),
        grid=grid,
        in_specs=[
            # q / k / v slabs are column-blocks of the same fused qkv tensor;
            # the BlockSpec DMA does the split for free (no wrapper transpose).
            pl.BlockSpec((1, tq, C), lambda b, qi: (b, qi, 0)),            # q
            pl.BlockSpec((1, T, C), lambda b, qi: (b, 0, 1), **kv_kwargs),  # k
            pl.BlockSpec((1, T, C), lambda b, qi: (b, 0, 2), **kv_kwargs),  # v
            pl.BlockSpec((1, 1, T), lambda b, qi: (b, 0, 0)),              # mask
        ],
        out_specs=pl.BlockSpec((1, tq, C), lambda b, qi: (b, qi, 0)),
        compiler_params=pltpu.CompilerParams(
            dimension_semantics=("parallel", "parallel"),
            vmem_limit_bytes=_vmem_limit_bytes()),
    )(qkv, qkv, qkv, mask3)


# ----------------------------------------------------------------------------
# Full module forward
# ----------------------------------------------------------------------------
def masked_multi_head_attention(x, attention_mask, params, num_heads):
    B, T, C = x.shape
    head_dim = C // num_heads

    # c_attn: (B*T, C) @ (C, 3C) + b -> fused qkv, kept bf16 in HBM (every
    # consumer feeds the MXU in bf16 anyway, so this costs no extra rounding
    # and halves attention DMA / VMEM).
    qkv = conv1d(x.reshape(B * T, C), params["c_attn_w"], params["c_attn_b"],
                 out_dtype=jnp.bfloat16)
    qkv = qkv.reshape(B, T, 3 * C)

    # attention_mask: (B, T) padding mask over key positions
    mask3 = attention_mask.reshape(B, 1, T).astype(jnp.int32)

    # Attention produces (B, T, C) directly (no head transpose round trips).
    try:
        o = jax.block_until_ready(
            fused_masked_attention(qkv, mask3, num_heads, head_dim,
                                   single_buffer_kv=True))
    except Exception:
        # Fallback if this Pallas build rejects pipeline_mode=pl.Buffered(1);
        # identical kernel with default double-buffered K/V.
        o = fused_masked_attention(qkv, mask3, num_heads, head_dim,
                                   single_buffer_kv=False)

    # c_proj: (B*T, C) @ (C, C) + b, final output back in the input dtype.
    out = conv1d(o.reshape(B * T, C), params["c_proj_w"], params["c_proj_b"],
                 out_dtype=x.dtype)
    return out.reshape(B, T, C)


# ----------------------------------------------------------------------------
# Pure-JAX reference (mirrors the PyTorch module semantics, full f32)
# ----------------------------------------------------------------------------
def reference_forward(x, attention_mask, params, num_heads):
    B, T, C = x.shape
    D = C // num_heads
    qkv = x @ params["c_attn_w"] + params["c_attn_b"]
    q, k, v = jnp.split(qkv, 3, axis=2)
    rs = lambda t: t.reshape(B, T, num_heads, D).transpose(0, 2, 1, 3)
    q, k, v = rs(q), rs(k), rs(v)
    s = jnp.einsum("bhqd,bhkd->bhqk", q, k) / (D ** 0.5)
    causal = jnp.tril(jnp.ones((T, T)))[None, None]
    s = jnp.where(causal == 0, jnp.finfo(s.dtype).min, s)
    am = attention_mask[:, None, None, :]
    s = jnp.where(am == 0, -jnp.inf, s)
    p = jax.nn.softmax(s, axis=-1)
    o = jnp.einsum("bhqk,bhkd->bhqd", p, v)
    o = o.transpose(0, 2, 1, 3).reshape(B, T, C)
    return o @ params["c_proj_w"] + params["c_proj_b"]


if __name__ == "__main__":
    # Small GPT-2-like config (C a multiple of 128 so all blocks are lane-aligned)
    B, T = 2, 8
    n_embd, n_head = 128, 4

    key = jax.random.PRNGKey(0)
    kx, k1, k2, k3, k4 = jax.random.split(key, 5)

    x = jax.random.normal(kx, (B, T, n_embd), dtype=jnp.float32)
    # padding mask: last 2 tokens of batch 1 are padding
    attention_mask = jnp.array(
        [[1] * T, [1] * (T - 2) + [0, 0]], dtype=jnp.int32)

    params = {
        "c_attn_w": 0.02 * jax.random.normal(k1, (n_embd, 3 * n_embd), jnp.float32),
        "c_attn_b": 0.01 * jax.random.normal(k3, (3 * n_embd,), jnp.float32),
        "c_proj_w": 0.02 * jax.random.normal(k2, (n_embd, n_embd), jnp.float32),
        "c_proj_b": 0.01 * jax.random.normal(k4, (n_embd,), jnp.float32),
    }

    out = masked_multi_head_attention(x, attention_mask, params, n_head)
    out = jax.block_until_ready(out)

    ref = reference_forward(x, attention_mask, params, n_head)
    assert out.shape == (B, T, n_embd)
    assert out.dtype == x.dtype
    # Tolerance accommodates bf16 MXU operands (qkv / attention intermediates
    # round-trip through bf16) plus the EUP approx-reciprocal in the softmax;
    # expected max abs error is ~1-2e-3, well inside this bound, while real
    # bugs (mask / scale / head mixing) produce >1e-2 deviations.
    assert jnp.allclose(out, ref, atol=1e-2, rtol=1e-2), \
        float(jnp.max(jnp.abs(out - ref)))

    print("KERNEL_OK")
</pallas_src>

<mosaic_0001>
module attributes {stable_mosaic.version = 11 : i64} {
  func.func @_linear_kernel(%arg0: i32, %arg1: i32, %arg2: i32, %arg3: memref<16x128xbf16, #tpu.memory_space<vmem>>, %arg4: memref<128x384xbf16, #tpu.memory_space<vmem>>, %arg5: memref<1x384xf32, #tpu.memory_space<vmem>>, %arg6: memref<16x384xbf16, #tpu.memory_space<vmem>>, %arg7: memref<16x384xf32, #tpu.memory_space<vmem>>) attributes {dimension_semantics = [#tpu.dimension_semantics<parallel>, #tpu.dimension_semantics<parallel>, #tpu.dimension_semantics<arbitrary>], iteration_bounds = array<i64: 1, 1, 1>, scalar_prefetch = 0 : i64, scratch_operands = 1 : i64, tpu.core_type = #tpu.core_type<tc>, window_params = [{transform_indices = @transform_0, window_bounds = array<i64: 16, 128>}, {transform_indices = @transform_1, window_bounds = array<i64: 128, 384>}, {transform_indices = @transform_2, window_bounds = array<i64: 1, 384>}, {transform_indices = @transform_3, window_bounds = array<i64: 16, 384>}]} {
    %c0_i32 = arith.constant 0 : i32
    %0 = arith.cmpi eq, %arg2, %c0_i32 : i32
    %1 = arith.extui %0 : i1 to i32
    %c0_i32_0 = arith.constant 0 : i32
    %2 = arith.cmpi ne, %1, %c0_i32_0 : i32
    scf.if %2 {
      %cst_10 = arith.constant 0.000000e+00 : f32
      %12 = vector.broadcast %cst_10 : f32 to vector<16x384xf32>
      %c0_11 = arith.constant 0 : index
      %c0_12 = arith.constant 0 : index
      %13 = vector.load %arg7[%c0_11, %c0_12] : memref<16x384xf32, #tpu.memory_space<vmem>>, vector<16x384xf32>
      tpu.vector_store %arg7[%c0_11, %c0_12], %12 {strides = array<i32>} : memref<16x384xf32, #tpu.memory_space<vmem>>, vector<16x384xf32>,
    } else {
    }
    %c0 = arith.constant 0 : index
    %c0_1 = arith.constant 0 : index
    %3 = vector.load %arg7[%c0, %c0_1] : memref<16x384xf32, #tpu.memory_space<vmem>>, vector<16x384xf32>
    %c0_2 = arith.constant 0 : index
    %c0_3 = arith.constant 0 : index
    %4 = vector.load %arg3[%c0_2, %c0_3] : memref<16x128xbf16, #tpu.memory_space<vmem>>, vector<16x128xbf16>
    %c0_4 = arith.constant 0 : index
    %c0_5 = arith.constant 0 : index
    %5 = vector.load %arg4[%c0_4, %c0_5] : memref<128x384xbf16, #tpu.memory_space<vmem>>, vector<128x384xbf16>
    %cst = arith.constant dense<0.000000e+00> : vector<16x384xf32>
    %6 = tpu.matmul %4, %5, %cst {dimension_numbers = #tpu.dot_dimension_numbers<[1], [0], [0], [1], [0, 0, 1, 1], [], []>} : vector<16x128xbf16>, vector<128x384xbf16>, vector<16x384xf32> -> vector<16x384xf32>
    %7 = arith.addf %3, %6 : vector<16x384xf32>
    %c0_6 = arith.constant 0 : index
    %c0_7 = arith.constant 0 : index
    %8 = vector.load %arg7[%c0_6, %c0_7] : memref<16x384xf32, #tpu.memory_space<vmem>>, vector<16x384xf32>
    tpu.vector_store %arg7[%c0_6, %c0_7], %7 {strides = array<i32>} : memref<16x384xf32, #tpu.memory_space<vmem>>, vector<16x384xf32>,
    %c0_i32_8 = arith.constant 0 : i32
    %9 = arith.cmpi eq, %arg2, %c0_i32_8 : i32
    %10 = arith.extui %9 : i1 to i32
    %c0_i32_9 = arith.constant 0 : i32
    %11 = arith.cmpi ne, %10, %c0_i32_9 : i32
    scf.if %11 {
      %c0_10 = arith.constant 0 : index
      %c0_11 = arith.constant 0 : index
      %12 = vector.load %arg7[%c0_10, %c0_11] : memref<16x384xf32, #tpu.memory_space<vmem>>, vector<16x384xf32>
      %c0_12 = arith.constant 0 : index
      %c0_13 = arith.constant 0 : index
      %13 = vector.load %arg5[%c0_12, %c0_13] : memref<1x384xf32, #tpu.memory_space<vmem>>, vector<1x384xf32>
      %14 = vector.broadcast %13 : vector<1x384xf32> to vector<16x384xf32>
      %15 = arith.addf %12, %14 : vector<16x384xf32>
      %16 = arith.truncf %15 : vector<16x384xf32> to vector<16x384xbf16>
      %c0_14 = arith.constant 0 : index
      %c0_15 = arith.constant 0 : index
      %17 = vector.load %arg6[%c0_14, %c0_15] : memref<16x384xbf16, #tpu.memory_space<vmem>>, vector<16x384xbf16>
      tpu.vector_store %arg6[%c0_14, %c0_15], %16 {strides = array<i32>} : memref<16x384xbf16, #tpu.memory_space<vmem>>, vector<16x384xbf16>,
    } else {
    }
    return
  }
  func.func @transform_0(%arg0: i32, %arg1: i32, %arg2: i32) -> (i32, i32) {
    %c0_i32 = arith.constant 0 : i32
    return %arg0, %arg2 : i32, i32
  }
  func.func @transform_1(%arg0: i32, %arg1: i32, %arg2: i32) -> (i32, i32) {
    %c0_i32 = arith.constant 0 : i32
    return %arg2, %arg1 : i32, i32
  }
  func.func @transform_2(%arg0: i32, %arg1: i32, %arg2: i32) -> (i32, i32) {
    %c0_i32 = arith.constant 0 : i32
    %c0_i32_0 = arith.constant 0 : i32
    return %c0_i32, %arg1 : i32, i32
  }
  func.func @transform_3(%arg0: i32, %arg1: i32, %arg2: i32) -> (i32, i32) {
    %c0_i32 = arith.constant 0 : i32
    return %arg0, %arg1 : i32, i32
  }
}

</mosaic_0001>

<llo_original>
// kernel: tpu_custom_call.1
$region0: #{tpu_custom_call.1}
  #allocation0 [shape = 'u32[]', space=smem, size = 0x4, offset = 0x4, fixed_abs, tag = 'smem constant byte address 0x4 - core index']
  #allocation1 [shape = 'u32[72,128]{1,0:T(1,128)}', space=vmem, size = 0x9000, scoped, tag = 'internal scratch']
  #allocation2 [shape = 'f32[16,384]{1,0:T(8,128)}', space=vmem, size = 0x6000, scoped, tag = 'scratch operand']
  %s0 = inlined_call_operand.hbm [shape: bf16[16,128], index: 0, kind: input, shape index: {}]
  %s1 = inlined_call_operand.hbm [shape: bf16[128,384], index: 1, kind: input, shape index: {}]
  %s2 = inlined_call_operand.hbm [shape: f32[1,384], index: 2, kind: input, shape index: {}]
  %s3 = inlined_call_operand.hbm [shape: bf16[16,384], index: 3, kind: output, shape index: {}]
  %s4 = sld [smem:[#allocation0]]
  $region42: #{tpu_custom_call.1} parent=0
    _
  %s6 = ssub.s32 1, %s4
  %s7 = scalar_select 0, %s6, %s4
  $region1: #{tpu_custom_call.1} parent=0
    #allocation3 [shape = 'u8[4096]{0}', space=vmem, size = 0x1000, scoped, tag = 'input window, operand 0, single buffered']
    #allocation4 [shape = 's32[1]{0}', space=sflag, size = 0x4, scoped, tag = 'scoped memory for tpu_custom_call.1']
    #allocation5 [shape = 's32[1]{0}', space=sflag, size = 0x4, scoped, tag = 'scoped memory for tpu_custom_call.1']
    #allocation6 [shape = 'u8[98304]{0}', space=vmem, size = 0x18000, scoped, tag = 'input window, operand 1, single buffered']
    #allocation7 [shape = 's32[1]{0}', space=sflag, size = 0x4, scoped, tag = 'scoped memory for tpu_custom_call.1']
    #allocation8 [shape = 'u8[1536]{0}', space=vmem, size = 0x800, scoped, tag = 'input window, operand 2, single buffered']
    #allocation9 [shape = 'u8[12288]{0}', space=vmem, size = 0x3000, scoped, tag = 'output window, operand 0, single buffered']
    %8 = vsyncpa [#allocation4], 0
    %9 = vsyncpa [#allocation7], 0
    %10 = vsyncpa [#allocation5], 0
    // Predicated region
    $region2: #{tpu_custom_call.1} parent=1 // pred_check
      _
    $region3: #{tpu_custom_call.1} parent=1 // pred_check_branch
      %12 = sbr.rel (0) target = $region5
    $region4: #{tpu_custom_call.1} parent=1 // pred_region
      %14 = vsyncadd [#allocation4], 0
      %s15 = sshll.u32 %s0, 4
      %s16 = int_to_ptr.hbm [resolvable:$true] %s15
      %s17 = sshll.u32 [#allocation3], 4
      %s18 = int_to_ptr.vmem [resolvable:$true] %s17
      %23 = dma.hbm_to_vmem [thread:$0]  %s16, 128, %s18, [#allocation4], 64, 64, 4
    $region5: #{tpu_custom_call.1} parent=1 // pred_fallthru
      _
    // Predicated region
    $region6: #{tpu_custom_call.1} parent=1 // pred_check
      _
    $region7: #{tpu_custom_call.1} parent=1 // pred_check_branch
      %25 = sbr.rel (0) target = $region9
    $region8: #{tpu_custom_call.1} parent=1 // pred_region
      %27 = vsyncadd [#allocation7], 0
      %s28 = sshll.u32 %s1, 4
      %s29 = int_to_ptr.hbm [resolvable:$true] %s28
      %s30 = sshll.u32 [#allocation6], 4
      %s31 = int_to_ptr.vmem [resolvable:$true] %s30
      %36 = dma.hbm_to_vmem [thread:$0]  %s29, 3072, %s31, [#allocation7], 192, 192, 12
    $region9: #{tpu_custom_call.1} parent=1 // pred_fallthru
      _
    // Predicated region
    $region10: #{tpu_custom_call.1} parent=1 // pred_check
      _
    $region11: #{tpu_custom_call.1} parent=1 // pred_check_branch
      %38 = sbr.rel (0) target = $region13
    $region12: #{tpu_custom_call.1} parent=1 // pred_region
      %40 = vsyncadd [#allocation7], 0
      %s42 = sshll.u32 %s2, 4
      %s43 = int_to_ptr.hbm [resolvable:$true] %s42
      %s44 = sshll.u32 [#allocation8], 4
      %s45 = int_to_ptr.vmem [resolvable:$true] %s44
      %47 = dma.hbm_to_vmem [thread:$0]  %s43, 48, %s45, [#allocation7]
    $region13: #{tpu_custom_call.1} parent=1 // pred_fallthru
      _
    // Predicated region
    $region14: #{tpu_custom_call.1} parent=1 // pred_check
      _
    $region15: #{tpu_custom_call.1} parent=1 // pred_check_branch
      %49 = sbr.rel (0) target = $region17
    $region16: #{tpu_custom_call.1} parent=1 // pred_region
      %51 = dma.done [#allocation4], 128
    $region17: #{tpu_custom_call.1} parent=1 // pred_fallthru
      _
    // Predicated region
    $region18: #{tpu_custom_call.1} parent=1 // pred_check
      _
    $region19: #{tpu_custom_call.1} parent=1 // pred_check_branch
      %53 = sbr.rel (0) target = $region21
    $region20: #{tpu_custom_call.1} parent=1 // pred_region
      %55 = dma.done [#allocation7], 3072
    $region21: #{tpu_custom_call.1} parent=1 // pred_fallthru
      _
    // Predicated region
    $region22: #{tpu_custom_call.1} parent=1 // pred_check
      _
    $region23: #{tpu_custom_call.1} parent=1 // pred_check_branch
      %57 = sbr.rel (0) target = $region25
    $region24: #{tpu_custom_call.1} parent=1 // pred_region
      %59 = dma.done [#allocation7], 48
    $region25: #{tpu_custom_call.1} parent=1 // pred_fallthru
      _
    %p60 = scmp.eq.s32.totalorder 0, 0
    // Predicated region
    $region26: #{tpu_custom_call.1} parent=1 // pred_check
      %p61 = pneg %p60
    $region27: #{tpu_custom_call.1} parent=1 // pred_check_branch
      %63 = sbr.rel (%p61) target = $region29
    $region28: #{tpu_custom_call.1} parent=1 // pred_region
      %64 = vst [vmem:[#allocation2] sm:$0xff] 0.0
      %65 = vst [vmem:[#allocation2 + $0x8] sm:$0xff] 0.0
      %66 = vst [vmem:[#allocation2 + $0x10] sm:$0xff] 0.0
      %67 = vst [vmem:[#allocation2 + $0x18] sm:$0xff] 0.0
      %68 = vst [vmem:[#allocation2 + $0x20] sm:$0xff] 0.0
      %69 = vst [vmem:[#allocation2 + $0x28] sm:$0xff] 0.0
    $region29: #{tpu_custom_call.1} parent=1 // pred_fallthru
      _
    %v70 = vld [vmem:[#allocation2] sm:$0xff]
    %v71 = vld [vmem:[#allocation2 + $0x8] sm:$0xff]
    %v72 = vld [vmem:[#allocation2 + $0x10] sm:$0xff]
    %v73 = vld [vmem:[#allocation2 + $0x18] sm:$0xff]
    %v74 = vld [vmem:[#allocation2 + $0x20] sm:$0xff]
    %v75 = vld [vmem:[#allocation2 + $0x28] sm:$0xff]
    %v76 = vld [vmem:[#allocation3] sm:$0xf]
    %v77 = vld [vmem:[#allocation3 + $0x4] sm:$0xf]
    %v78 = vld [vmem:[#allocation6] sm:$0xff]
    %v79 = vld [vmem:[#allocation6 + $0x8] sm:$0xf]
    %v80 = vld [vmem:[#allocation6 + $0xc] sm:$0xff]
    %v81 = vld [vmem:[#allocation6 + $0x14] sm:$0xf]
    %v82 = vld [vmem:[#allocation6 + $0x18] sm:$0xff]
    %v83 = vld [vmem:[#allocation6 + $0x20] sm:$0xf]
    %v84 = vld [vmem:[#allocation6 + $0x24] sm:$0xff]
    %v85 = vld [vmem:[#allocation6 + $0x2c] sm:$0xf]
    %v86 = vld [vmem:[#allocation6 + $0x30] sm:$0xff]
    %v87 = vld [vmem:[#allocation6 + $0x38] sm:$0xf]
    %v88 = vld [vmem:[#allocation6 + $0x3c] sm:$0xff]
    %v89 = vld [vmem:[#allocation6 + $0x44] sm:$0xf]
    %v90 = vld [vmem:[#allocation6 + $0x48] sm:$0xff]
    %v91 = vld [vmem:[#allocation6 + $0x50] sm:$0xf]
    %v92 = vld [vmem:[#allocation6 + $0x54] sm:$0xff]
    %v93 = vld [vmem:[#allocation6 + $0x5c] sm:$0xf]
    %v94 = vld [vmem:[#allocation6 + $0x60] sm:$0xff]
    %v95 = vld [vmem:[#allocation6 + $0x68] sm:$0xf]
    %v96 = vld [vmem:[#allocation6 + $0x6c] sm:$0xff]
    %v97 = vld [vmem:[#allocation6 + $0x74] sm:$0xf]
    %v98 = vld [vmem:[#allocation6 + $0x78] sm:$0xff]
    %v99 = vld [vmem:[#allocation6 + $0x80] sm:$0xf]
    %v100 = vld [vmem:[#allocation6 + $0x84] sm:$0xff]
    %v101 = vld [vmem:[#allocation6 + $0x8c] sm:$0xf]
    %v102 = vld [vmem:[#allocation6 + $0x90] sm:$0xff]
    %v103 = vld [vmem:[#allocation6 + $0x98] sm:$0xf]
    %v104 = vld [vmem:[#allocation6 + $0x9c] sm:$0xff]
    %v105 = vld [vmem:[#allocation6 + $0xa4] sm:$0xf]
    %v106 = vld [vmem:[#allocation6 + $0xa8] sm:$0xff]
    %v107 = vld [vmem:[#allocation6 + $0xb0] sm:$0xf]
    %v108 = vld [vmem:[#allocation6 + $0xb4] sm:$0xff]
    %v109 = vld [vmem:[#allocation6 + $0xbc] sm:$0xf]
    %v112 = vunpack.c.l.b16 %v76
    %v113 = vunpack.c.l.b16 %v77
    %v114 = vpack.c.b16 %v113, %v112
    %v148 = vunpack.c.l.b16 %v78
    %v149 = vunpack.c.h.b16 %v78
    %v150 = vunpack.c.l.b16 %v79
    %v151 = vunpack.c.l.b16 %v80
    %v152 = vunpack.c.h.b16 %v80
    %v153 = vunpack.c.l.b16 %v81
    %v154 = vunpack.c.l.b16 %v82
    %v155 = vunpack.c.h.b16 %v82
    %v156 = vunpack.c.l.b16 %v83
    %v157 = vunpack.c.l.b16 %v84
    %v158 = vunpack.c.h.b16 %v84
    %v159 = vunpack.c.l.b16 %v85
    %v160 = vunpack.c.l.b16 %v86
    %v161 = vunpack.c.h.b16 %v86
    %v162 = vunpack.c.l.b16 %v87
    %v163 = vunpack.c.l.b16 %v88
    %v164 = vunpack.c.h.b16 %v88
    %v165 = vunpack.c.l.b16 %v89
    %v166 = vunpack.c.l.b16 %v90
    %v167 = vunpack.c.h.b16 %v90
    %v168 = vunpack.c.l.b16 %v91
    %v169 = vunpack.c.l.b16 %v92
    %v170 = vunpack.c.h.b16 %v92
    %v171 = vunpack.c.l.b16 %v93
    %v172 = vunpack.c.l.b16 %v94
    %v173 = vunpack.c.h.b16 %v94
    %v174 = vunpack.c.l.b16 %v95
    %v175 = vunpack.c.l.b16 %v96
    %v176 = vunpack.c.h.b16 %v96
    %v177 = vunpack.c.l.b16 %v97
    %v178 = vunpack.c.l.b16 %v98
    %v179 = vunpack.c.h.b16 %v98
    %v180 = vunpack.c.l.b16 %v99
    %v181 = vunpack.c.l.b16 %v100
    %v182 = vunpack.c.h.b16 %v100
    %v183 = vunpack.c.l.b16 %v101
    %v184 = vunpack.c.l.b16 %v102
    %v185 = vunpack.c.h.b16 %v102
    %v186 = vunpack.c.l.b16 %v103
    %v187 = vunpack.c.l.b16 %v104
    %v188 = vunpack.c.h.b16 %v104
    %v189 = vunpack.c.l.b16 %v105
    %v190 = vunpack.c.l.b16 %v106
    %v191 = vunpack.c.h.b16 %v106
    %v192 = vunpack.c.l.b16 %v107
    %v193 = vunpack.c.l.b16 %v108
    %v194 = vunpack.c.h.b16 %v108
    %v195 = vunpack.c.l.b16 %v109
    %v196 = vpack.c.b16 %v151, %v148
    %v197 = vpack.c.b16 %v152, %v149
    %v198 = vpack.c.b16 %v153, %v150
    %v199 = vpack.c.b16 %v157, %v154
    %v200 = vpack.c.b16 %v158, %v155
    %v201 = vpack.c.b16 %v159, %v156
    %v202 = vpack.c.b16 %v163, %v160
    %v203 = vpack.c.b16 %v164, %v161
    %v204 = vpack.c.b16 %v165, %v162
    %v205 = vpack.c.b16 %v169, %v166
    %v206 = vpack.c.b16 %v170, %v167
    %v207 = vpack.c.b16 %v171, %v168
    %v208 = vpack.c.b16 %v175, %v172
    %v209 = vpack.c.b16 %v176, %v173
    %v210 = vpack.c.b16 %v177, %v174
    %v211 = vpack.c.b16 %v181, %v178
    %v212 = vpack.c.b16 %v182, %v179
    %v213 = vpack.c.b16 %v183, %v180
    %v214 = vpack.c.b16 %v187, %v184
    %v215 = vpack.c.b16 %v188, %v185
    %v216 = vpack.c.b16 %v189, %v186
    %v217 = vpack.c.b16 %v193, %v190
    %v218 = vpack.c.b16 %v194, %v191
    %v219 = vpack.c.b16 %v195, %v192
    %244 = vmatpush.bf16.msra.mxu0 %v217
    %245 = vmatpush.bf16.msra.mxu0 %v214
    %246 = vmatpush.bf16.msra.mxu0 %v211
    %247 = vmatpush.bf16.msra.mxu0 %v208
    %248 = vmatpush.bf16.msra.mxu0 %v205
    %249 = vmatpush.bf16.msra.mxu0 %v202
    %250 = vmatpush.bf16.msra.mxu0 %v199
    %251 = vmatpush.bf16.msra.mxu0 %v196
    %252 = vmatmul.bf16.gmra.mxu0 %v114
    %v253 = vpop.f32.mrf.mxu0
    %v254 = vadd.f32 0.0, %v253
    %v255 = vpop.f32.mrf.mxu0
    %v256 = vadd.f32 0.0, %v255
    %257 = vdwg.mxu0
    %258 = vmatpush.bf16.msra.mxu0 %v218
    %259 = vmatpush.bf16.msra.mxu0 %v215
    %260 = vmatpush.bf16.msra.mxu0 %v212
    %261 = vmatpush.bf16.msra.mxu0 %v209
    %262 = vmatpush.bf16.msra.mxu0 %v206
    %263 = vmatpush.bf16.msra.mxu0 %v203
    %264 = vmatpush.bf16.msra.mxu0 %v200
    %265 = vmatpush.bf16.msra.mxu0 %v197
    %266 = vmatmul.bf16.gmra.mxu0 %v114
    %v267 = vpop.f32.mrf.mxu0
    %v268 = vadd.f32 0.0, %v267
    %v269 = vpop.f32.mrf.mxu0
    %v270 = vadd.f32 0.0, %v269
    %271 = vdwg.mxu0
    %272 = vmatpush.bf16.msra.mxu0 %v219
    %273 = vmatpush.bf16.msra.mxu0 %v216
    %274 = vmatpush.bf16.msra.mxu0 %v213
    %275 = vmatpush.bf16.msra.mxu0 %v210
    %276 = vmatpush.bf16.msra.mxu0 %v207
    %277 = vmatpush.bf16.msra.mxu0 %v204
    %278 = vmatpush.bf16.msra.mxu0 %v201
    %279 = vmatpush.bf16.msra.mxu0 %v198
    %280 = vmatmul.bf16.gmra.mxu0 %v114
    %v281 = vpop.f32.mrf.mxu0
    %v282 = vadd.f32 0.0, %v281
    %v283 = vpop.f32.mrf.mxu0
    %v284 = vadd.f32 0.0, %v283
    %285 = vdwg.mxu0
    %v286 = vadd.f32 %v70, %v254
    %v287 = vadd.f32 %v71, %v268
    %v288 = vadd.f32 %v72, %v282
    %v289 = vadd.f32 %v73, %v256
    %v290 = vadd.f32 %v74, %v270
    %v291 = vadd.f32 %v75, %v284
    %292 = vst [vmem:[#allocation2] sm:$0xff] %v286
    %293 = vst [vmem:[#allocation2 + $0x8] sm:$0xff] %v287
    %294 = vst [vmem:[#allocation2 + $0x10] sm:$0xff] %v288
    %295 = vst [vmem:[#allocation2 + $0x18] sm:$0xff] %v289
    %296 = vst [vmem:[#allocation2 + $0x20] sm:$0xff] %v290
    %297 = vst [vmem:[#allocation2 + $0x28] sm:$0xff] %v291
    // Predicated region
    $region30: #{tpu_custom_call.1} parent=1 // pred_check
      %p298 = pneg %p60
    $region31: #{tpu_custom_call.1} parent=1 // pred_check_branch
      %300 = sbr.rel (%p298) target = $region33
    $region32: #{tpu_custom_call.1} parent=1 // pred_region
      %v301 = vld [vmem:[#allocation2] sm:$0xff]
      %v302 = vld [vmem:[#allocation2 + $0x8] sm:$0xff]
      %v303 = vld [vmem:[#allocation2 + $0x10] sm:$0xff]
      %v304 = vld [vmem:[#allocation2 + $0x18] sm:$0xff]
      %v305 = vld [vmem:[#allocation2 + $0x20] sm:$0xff]
      %v306 = vld [vmem:[#allocation2 + $0x28] sm:$0xff]
      %v307 = vld [vmem:[#allocation8] sm:$0x7]
      %v309 = vperm.slane %v307, 0
      %v310 = vperm.slane %v307, 1
      %v311 = vperm.slane %v307, 2
      %v315 = vadd.f32 %v301, %v309
      %v316 = vadd.f32 %v302, %v310
      %v317 = vadd.f32 %v303, %v311
      %v318 = vadd.f32 %v304, %v309
      %v319 = vadd.f32 %v305, %v310
      %v320 = vadd.f32 %v306, %v311
      %v321 = vpack.c.bf16 %v316, %v315
      %v322 = vpack.c.bf16 %v317, %v317
      %v323 = vpack.c.bf16 %v319, %v318
      %v324 = vpack.c.bf16 %v320, %v320
      %325 = vst [vmem:[#allocation9] sm:$0xff] %v321
      %326 = vst [vmem:[#allocation9 + $0x8] sm:$0xf] %v322
      %327 = vst [vmem:[#allocation9 + $0xc] sm:$0xff] %v323
      %328 = vst [vmem:[#allocation9 + $0x14] sm:$0xf] %v324
    $region33: #{tpu_custom_call.1} parent=1 // pred_fallthru
      _
    // Predicated region
    $region34: #{tpu_custom_call.1} parent=1 // pred_check
      _
    $region35: #{tpu_custom_call.1} parent=1 // pred_check_branch
      %330 = sbr.rel (0) target = $region37
    $region36: #{tpu_custom_call.1} parent=1 // pred_region
      %332 = vsyncadd [#allocation5], 0
      %s333 = sshll.u32 [#allocation9], 4
      %s334 = int_to_ptr.vmem [resolvable:$true] %s333
      %s335 = sshll.u32 %s3, 4
      %s336 = int_to_ptr.hbm [resolvable:$true] %s335
      %341 = dma.vmem_to_hbm [thread:$0]  %s334, 384, %s336, [#allocation5], 192, 192, 12
    $region37: #{tpu_custom_call.1} parent=1 // pred_fallthru
      _
    // Predicated region
    $region38: #{tpu_custom_call.1} parent=1 // pred_check
      _
    $region39: #{tpu_custom_call.1} parent=1 // pred_check_branch
      %343 = sbr.rel (0) target = $region41
    $region40: #{tpu_custom_call.1} parent=1 // pred_region
      %345 = dma.done [#allocation5], 384
    $region41: #{tpu_custom_call.1} parent=1 // pred_fallthru
      _
    %346 = vsyncpa [#allocation4], 1
    %347 = vsyncpa [#allocation7], 1
    %348 = vsyncpa [#allocation5], 1

</llo_original>
